<compile_context>
chip_gen: v6e
topology: v6e:2x2x1
jax: 0.10.0
libtpu: 0.0.40
codegen_flags: <defaults>
</compile_context>

<pallas_src>
import math
import functools

import jax
import jax.numpy as jnp
from jax.experimental import pallas as pl
from jax.experimental.pallas import tpu as pltpu


_VMEM_LIMIT = 56 * 1024 * 1024   # above the 16/32 MiB defaults, below v7x 64 MiB


# ----------------------------------------------------------------------------
# Tiling helper
# ----------------------------------------------------------------------------
def _pick_tile(dim, target, align):
    """Largest tile <= target that divides `dim` and is a multiple of `align`.

    Falls back to the full dim only when dim <= target or no aligned divisor
    exists (block == full array dim is always legal).
    """
    if dim <= target:
        return dim
    t = (target // align) * align
    while t >= align:
        if dim % t == 0:
            return t
        t -= align
    return dim


# ----------------------------------------------------------------------------
# Kernels
# ----------------------------------------------------------------------------
def matmul_bias_kernel(a_ref, w_ref, b_ref, o_ref, acc_ref, *, activation):
    """o = act(a @ w + bias); grid = (M/tm, N/tn, K/tk); bf16 MXU, f32 acc."""
    @pl.when(pl.program_id(2) == 0)
    def _():
        acc_ref[...] = jnp.zeros_like(acc_ref)

    acc_ref[...] += jnp.dot(a_ref[...].astype(jnp.bfloat16),
                            w_ref[...].astype(jnp.bfloat16),
                            preferred_element_type=jnp.float32)

    @pl.when(pl.program_id(2) == pl.num_programs(2) - 1)
    def _():
        out = acc_ref[...] + b_ref[...]
        if activation == "relu":
            out = jnp.maximum(out, 0.0)
        o_ref[...] = out.astype(o_ref.dtype)


def matmul_bias_add_ln_kernel(a_ref, w_ref, b_ref, r_ref, g_ref, beta_ref,
                              o_ref, acc_ref, *, eps):
    """o = LayerNorm(res + a @ w + bias) * gamma + beta, fused epilogue.

    grid = (M/tm, K/tk); output block spans the full N (needed for the LN
    lane reduction); residual / gamma / beta blocks are K-invariant so they
    stay VMEM-resident across the reduction loop.
    """
    @pl.when(pl.program_id(1) == 0)
    def _():
        acc_ref[...] = jnp.zeros_like(acc_ref)

    acc_ref[...] += jnp.dot(a_ref[...].astype(jnp.bfloat16),
                            w_ref[...].astype(jnp.bfloat16),
                            preferred_element_type=jnp.float32)

    @pl.when(pl.program_id(1) == pl.num_programs(1) - 1)
    def _():
        y = acc_ref[...] + b_ref[...] + r_ref[...].astype(jnp.float32)
        mean = jnp.mean(y, axis=-1, keepdims=True)
        c = y - mean
        var = jnp.mean(c * c, axis=-1, keepdims=True)
        o_ref[...] = (c * jax.lax.rsqrt(var + eps) * g_ref[...]
                      + beta_ref[...]).astype(o_ref.dtype)


def mha_attn_kernel(*refs, nhead, scale, has_mask, has_kpm):
    """All heads of one batch element per grid step.

    Inputs: fused qkv slab (1, S, 3D); optional (S, S) additive attn mask;
    optional (1, 1, S) additive key-padding mask.  Output: (1, S, D), a single
    lane-dense store.
    """
    it = iter(refs)
    qkv_ref = next(it)
    mask_ref = next(it) if has_mask else None
    kpm_ref = next(it) if has_kpm else None
    o_ref = next(it)

    qkv = qkv_ref[0]                               # (S, 3D) f32
    D = o_ref.shape[-1]
    Dh = D // nhead

    # Fold the 1/sqrt(Dh) scale into q once (S*D mults, not S*S per head).
    q = qkv[:, :D].astype(jnp.float32) * scale
    k = qkv[:, D:2 * D]
    v = qkv[:, 2 * D:3 * D]

    add = None
    if has_mask:
        add = mask_ref[...].astype(jnp.float32)    # (S, S), VMEM resident
    if has_kpm:
        kpm = kpm_ref[0].astype(jnp.float32)       # (1, S) -> broadcast over q
        add = kpm if add is None else add + kpm

    outs = []
    for h in range(nhead):                         # static unroll over heads
        lo, hi = h * Dh, (h + 1) * Dh
        qh = q[:, lo:hi].astype(jnp.bfloat16)
        kh = k[:, lo:hi].astype(jnp.bfloat16)
        vh = v[:, lo:hi].astype(jnp.bfloat16)
        # contract last dims of both operands (no explicit K transpose)
        s = jax.lax.dot_general(qh, kh, (((1,), (1,)), ((), ())),
                                preferred_element_type=jnp.float32)  # (S, S)
        if add is not None:
            s = s + add
        m = jnp.max(s, axis=-1, keepdims=True)
        p = jnp.exp(s - m)
        l = jnp.sum(p, axis=-1, keepdims=True)
        p = p * pl.reciprocal(l, approx=True)      # EUP reciprocal, not VALU div
        oh = jnp.dot(p.astype(jnp.bfloat16), vh,
                     preferred_element_type=jnp.float32)             # (S, Dh)
        outs.append(oh)

    o_ref[0] = jnp.concatenate(outs, axis=-1).astype(o_ref.dtype)


def ln_kernel(x_ref, g_ref, b_ref, o_ref, *, eps):
    """o = LayerNorm(x) * gamma + beta (final decoder norm)."""
    y = x_ref[...].astype(jnp.float32)
    mean = jnp.mean(y, axis=-1, keepdims=True)
    c = y - mean
    var = jnp.mean(c * c, axis=-1, keepdims=True)
    o_ref[...] = (c * jax.lax.rsqrt(var + eps) * g_ref[...]
                  + b_ref[...]).astype(o_ref.dtype)


# ----------------------------------------------------------------------------
# Pallas-backed ops
# ----------------------------------------------------------------------------
def linear(x, w_t, bias, activation=None, *, tm=256, tn=256, tk=512):
    """y = act(x @ w_t + bias);  x: (M, K) f32, w_t: (K, N) bf16, bias: (N,)."""
    M, K = x.shape
    _, N = w_t.shape
    tm = _pick_tile(M, tm, 8)
    tn = _pick_tile(N, tn, 128)
    tk = _pick_tile(K, tk, 128)
    kernel = functools.partial(matmul_bias_kernel, activation=activation)
    return pl.pallas_call(
        kernel,
        out_shape=jax.ShapeDtypeStruct((M, N), x.dtype),
        grid_spec=pltpu.PrefetchScalarGridSpec(
            num_scalar_prefetch=0,
            grid=(M // tm, N // tn, K // tk),
            in_specs=[
                pl.BlockSpec((tm, tk), lambda i, j, k: (i, k)),
                pl.BlockSpec((tk, tn), lambda i, j, k: (k, j)),
                pl.BlockSpec((1, tn), lambda i, j, k: (0, j)),   # bias resident
            ],
            out_specs=pl.BlockSpec((tm, tn), lambda i, j, k: (i, j)),
            scratch_shapes=[pltpu.VMEM((tm, tn), jnp.float32)],
        ),
        compiler_params=pltpu.CompilerParams(
            dimension_semantics=("parallel", "parallel", "arbitrary"),
            vmem_limit_bytes=_VMEM_LIMIT),
    )(x, w_t, bias.reshape(1, N))


def linear_add_ln(x, w_t, bias, res, gamma, beta, eps=1e-5, *, tm=256, tk=512):
    """y = LayerNorm(res + x @ w_t + bias) * gamma + beta (fused epilogue)."""
    M, K = x.shape
    _, N = w_t.shape
    tm = _pick_tile(M, tm, 8)
    tk = _pick_tile(K, tk, 128)
    kernel = functools.partial(matmul_bias_add_ln_kernel, eps=eps)
    return pl.pallas_call(
        kernel,
        out_shape=jax.ShapeDtypeStruct((M, N), x.dtype),
        grid_spec=pltpu.PrefetchScalarGridSpec(
            num_scalar_prefetch=0,
            grid=(M // tm, K // tk),
            in_specs=[
                pl.BlockSpec((tm, tk), lambda i, k: (i, k)),
                pl.BlockSpec((tk, N), lambda i, k: (k, 0)),
                pl.BlockSpec((1, N), lambda i, k: (0, 0)),       # bias resident
                pl.BlockSpec((tm, N), lambda i, k: (i, 0)),      # residual resident over k
                pl.BlockSpec((1, N), lambda i, k: (0, 0)),       # gamma
                pl.BlockSpec((1, N), lambda i, k: (0, 0)),       # beta
            ],
            out_specs=pl.BlockSpec((tm, N), lambda i, k: (i, 0)),
            scratch_shapes=[pltpu.VMEM((tm, N), jnp.float32)],
        ),
        compiler_params=pltpu.CompilerParams(
            dimension_semantics=("parallel", "arbitrary"),
            vmem_limit_bytes=_VMEM_LIMIT),
    )(x, w_t, bias.reshape(1, N), res, gamma.reshape(1, N), beta.reshape(1, N))


def mha_attention(qkv, attn_mask, kpm, nhead, scale):
    """qkv: (B, S, 3D) fused slab; attn_mask: (S, S) f32 additive or None;
    kpm: (B, 1, S) f32 additive or None.  Returns (B, S, D)."""
    B, S, threeD = qkv.shape
    D = threeD // 3
    has_mask = attn_mask is not None
    has_kpm = kpm is not None

    in_specs = [pl.BlockSpec((1, S, threeD), lambda b: (b, 0, 0))]
    args = [qkv]
    if has_mask:
        in_specs.append(pl.BlockSpec((S, S), lambda b: (0, 0)))  # resident
        args.append(attn_mask)
    if has_kpm:
        in_specs.append(pl.BlockSpec((1, 1, S), lambda b: (b, 0, 0)))
        args.append(kpm)

    kernel = functools.partial(mha_attn_kernel, nhead=nhead, scale=scale,
                               has_mask=has_mask, has_kpm=has_kpm)
    return pl.pallas_call(
        kernel,
        out_shape=jax.ShapeDtypeStruct((B, S, D), qkv.dtype),
        grid_spec=pltpu.PrefetchScalarGridSpec(
            num_scalar_prefetch=0,
            grid=(B,),
            in_specs=in_specs,
            out_specs=pl.BlockSpec((1, S, D), lambda b: (b, 0, 0)),
        ),
        compiler_params=pltpu.CompilerParams(
            dimension_semantics=("parallel",),
            vmem_limit_bytes=_VMEM_LIMIT),
    )(*args)


def layer_norm(x, gamma, beta, eps=1e-5, *, tm=256):
    M, D = x.shape
    tm = _pick_tile(M, tm, 8)
    kernel = functools.partial(ln_kernel, eps=eps)
    return pl.pallas_call(
        kernel,
        out_shape=jax.ShapeDtypeStruct((M, D), x.dtype),
        grid_spec=pltpu.PrefetchScalarGridSpec(
            num_scalar_prefetch=0,
            grid=(M // tm,),
            in_specs=[
                pl.BlockSpec((tm, D), lambda i: (i, 0)),
                pl.BlockSpec((1, D), lambda i: (0, 0)),
                pl.BlockSpec((1, D), lambda i: (0, 0)),
            ],
            out_specs=pl.BlockSpec((tm, D), lambda i: (i, 0)),
        ),
        compiler_params=pltpu.CompilerParams(
            dimension_semantics=("parallel",),
            vmem_limit_bytes=_VMEM_LIMIT),
    )(x, gamma.reshape(1, D), beta.reshape(1, D))


# ----------------------------------------------------------------------------
# Mask helpers, decoder layer & GPTDecoder (forward-pass, eval mode)
# ----------------------------------------------------------------------------
def _additive_mask(mask):
    """bool mask (True = masked) -> -1e9 additive; float mask passes through."""
    if mask is None:
        return None
    if mask.dtype == jnp.bool_:
        return jnp.where(mask, -1e9, 0.0).astype(jnp.float32)
    return mask.astype(jnp.float32)


def init_layer_params(key, d_model, nhead, dim_ff):
    ks = jax.random.split(key, 4)

    def u(k, shape, fan_in):
        bound = 1.0 / math.sqrt(fan_in)
        return jax.random.uniform(k, shape, jnp.float32, -bound, bound)

    # Weights pre-transposed (in, out) and stored bf16 (MXU-native dtype);
    # biases / LN params stay f32 (epilogue adds / normalization in f32).
    return {
        "w_qkv_t": u(ks[0], (d_model, 3 * d_model), d_model).astype(jnp.bfloat16),
        "b_qkv":   jnp.zeros((3 * d_model,), jnp.float32),
        "w_o_t":   u(ks[1], (d_model, d_model), d_model).astype(jnp.bfloat16),
        "b_o":     jnp.zeros((d_model,), jnp.float32),
        "w_ff1_t": u(ks[2], (d_model, dim_ff), d_model).astype(jnp.bfloat16),
        "b_ff1":   jnp.zeros((dim_ff,), jnp.float32),
        "w_ff2_t": u(ks[3], (dim_ff, d_model), dim_ff).astype(jnp.bfloat16),
        "b_ff2":   jnp.zeros((d_model,), jnp.float32),
        "ln1_g":   jnp.ones((d_model,), jnp.float32),
        "ln1_b":   jnp.zeros((d_model,), jnp.float32),
        "ln2_g":   jnp.ones((d_model,), jnp.float32),
        "ln2_b":   jnp.zeros((d_model,), jnp.float32),
    }


def decoder_layer_forward(x, p, attn_mask, kpm, nhead, B, S):
    """One GPT-style decoder layer on a batch-major (B*S, D) row view."""
    M, D = x.shape
    Dh = D // nhead

    # fused qkv projection -> (B*S, 3D); (B, S, 3D) is a free view
    qkv = linear(x, p["w_qkv_t"], p["b_qkv"])
    attn = mha_attention(qkv.reshape(B, S, 3 * D), attn_mask, kpm,
                         nhead, 1.0 / math.sqrt(Dh))          # (B, S, D)
    attn = attn.reshape(M, D)

    # out-projection with fused residual-add + LayerNorm epilogue
    y = linear_add_ln(attn, p["w_o_t"], p["b_o"], x, p["ln1_g"], p["ln1_b"])

    # feed-forward; ff2 fuses residual-add + LayerNorm epilogue
    h = linear(y, p["w_ff1_t"], p["b_ff1"], activation="relu", tn=512)
    z = linear_add_ln(h, p["w_ff2_t"], p["b_ff2"], y, p["ln2_g"], p["ln2_b"])
    return z


class GPTDecoder:
    """Stack of num_layers identical decoder layers + optional final norm.

    Mirrors torch's GPTDecoder(_get_clones(decoder_layer, N), norm): the layer
    is deep-copied, so all layers share the same *initial* parameters.
    Forward is eval-mode (dropout == identity).
    """

    def __init__(self, d_model, nhead, dim_feedforward, num_layers,
                 norm=True, *, key):
        self.d_model = d_model
        self.nhead = nhead
        self.num_layers = num_layers
        layer_params = init_layer_params(key, d_model, nhead, dim_feedforward)
        # deepcopy semantics: every layer starts from the same parameters
        self.layers = [dict(layer_params) for _ in range(num_layers)]
        self.norm = (jnp.ones((d_model,), jnp.float32),
                     jnp.zeros((d_model,), jnp.float32)) if norm else None

    def __call__(self, tgt, tgt_mask=None, tgt_key_padding_mask=None):
        S, B, D = tgt.shape
        attn_mask = _additive_mask(tgt_mask)                       # (S, S) or None
        kpm = _additive_mask(tgt_key_padding_mask)                 # (B, S) or None
        if kpm is not None:
            kpm = kpm.reshape(B, 1, S)

        # Batch-major layout once for the whole stack (no per-layer transposes).
        x = tgt.transpose(1, 0, 2).reshape(B * S, D)
        for p in self.layers:
            x = decoder_layer_forward(x, p, attn_mask, kpm, self.nhead, B, S)
        if self.norm is not None:
            g, b = self.norm
            x = layer_norm(x, g, b)
        return x.reshape(B, S, D).transpose(1, 0, 2)


# ----------------------------------------------------------------------------
# Pure-JAX reference (for the self-check)
# ----------------------------------------------------------------------------
def _ref_layer_norm(x, g, b, eps=1e-5):
    mean = x.mean(-1, keepdims=True)
    var = ((x - mean) ** 2).mean(-1, keepdims=True)
    return (x - mean) * jax.lax.rsqrt(var + eps) * g + b


def _ref_decoder_layer(x, p, am, kp, nhead):
    S, B, D = x.shape
    Dh = D // nhead
    hi = jax.lax.Precision.HIGHEST

    def lin(t, w_t, b):
        return jnp.einsum("sbd,df->sbf", t, w_t.astype(jnp.float32),
                          precision=hi) + b

    qkv = lin(x, p["w_qkv_t"], p["b_qkv"])
    q, k, v = jnp.split(qkv, 3, axis=-1)
    q = q.reshape(S, B, nhead, Dh)
    k = k.reshape(S, B, nhead, Dh)
    v = v.reshape(S, B, nhead, Dh)
    s = jnp.einsum("qbhd,kbhd->bhqk", q, k, precision=hi) / math.sqrt(Dh)
    if am is not None:
        s = s + am
    if kp is not None:
        s = s + kp[:, None, None, :]
    a = jax.nn.softmax(s, axis=-1)
    o = jnp.einsum("bhqk,kbhd->qbhd", a, v, precision=hi).reshape(S, B, D)
    o = lin(o, p["w_o_t"], p["b_o"])
    y = _ref_layer_norm(x + o, p["ln1_g"], p["ln1_b"])
    h = jnp.maximum(lin(y, p["w_ff1_t"], p["b_ff1"]), 0.0)
    h = lin(h, p["w_ff2_t"], p["b_ff2"])
    return _ref_layer_norm(y + h, p["ln2_g"], p["ln2_b"])


def _ref_gpt_decoder(dec, tgt, tgt_mask=None, tgt_key_padding_mask=None):
    am = _additive_mask(tgt_mask)
    kp = _additive_mask(tgt_key_padding_mask)
    out = tgt
    for p in dec.layers:
        out = _ref_decoder_layer(out, p, am, kp, dec.nhead)
    if dec.norm is not None:
        g, b = dec.norm
        out = _ref_layer_norm(out, g, b)
    return out


# ----------------------------------------------------------------------------
# Demo / self-check
# ----------------------------------------------------------------------------
if __name__ == "__main__":
    seq_len, batch, d_model, nhead, dim_ff, num_layers = 8, 2, 32, 4, 64, 2

    key = jax.random.PRNGKey(0)
    kx, kp = jax.random.split(key)
    x = jax.random.normal(kx, (seq_len, batch, d_model), dtype=jnp.float32)

    # Causal tgt_mask (bool, True = masked), as in GPT usage.
    causal = jnp.triu(jnp.ones((seq_len, seq_len), dtype=bool), k=1)
    # Key padding mask: last two positions of batch element 1 are padding.
    key_pad = jnp.array([[False] * seq_len,
                         [False] * (seq_len - 2) + [True] * 2])

    dec = GPTDecoder(d_model, nhead, dim_ff, num_layers, norm=True, key=kp)

    y = jax.block_until_ready(
        dec(x, tgt_mask=causal, tgt_key_padding_mask=key_pad))
    y_ref = _ref_gpt_decoder(dec, x, tgt_mask=causal,
                             tgt_key_padding_mask=key_pad)

    assert y.shape == x.shape and y.dtype == x.dtype
    max_err = float(jnp.max(jnp.abs(y - y_ref)))
    # bf16 MXU operands + approx reciprocal -> slightly relaxed tolerance.
    assert jnp.allclose(y, y_ref, atol=3e-2, rtol=3e-2), f"max_err={max_err}"

    print("KERNEL_OK")
</pallas_src>

<mosaic_0001>
module attributes {stable_mosaic.version = 11 : i64} {
  func.func @matmul_bias_kernel(%arg0: i32, %arg1: i32, %arg2: i32, %arg3: memref<16x32xf32, #tpu.memory_space<vmem>>, %arg4: memref<32x96xbf16, #tpu.memory_space<vmem>>, %arg5: memref<1x96xf32, #tpu.memory_space<vmem>>, %arg6: memref<16x96xf32, #tpu.memory_space<vmem>>, %arg7: memref<16x96xf32, #tpu.memory_space<vmem>>) attributes {dimension_semantics = [#tpu.dimension_semantics<parallel>, #tpu.dimension_semantics<parallel>, #tpu.dimension_semantics<arbitrary>], iteration_bounds = array<i64: 1, 1, 1>, scalar_prefetch = 0 : i64, scratch_operands = 1 : i64, tpu.core_type = #tpu.core_type<tc>, window_params = [{transform_indices = @transform_0, window_bounds = array<i64: 16, 32>}, {transform_indices = @transform_1, window_bounds = array<i64: 32, 96>}, {transform_indices = @transform_2, window_bounds = array<i64: 1, 96>}, {transform_indices = @transform_3, window_bounds = array<i64: 16, 96>}]} {
    %c0_i32 = arith.constant 0 : i32
    %0 = arith.cmpi eq, %arg2, %c0_i32 : i32
    %1 = arith.extui %0 : i1 to i32
    %c0_i32_0 = arith.constant 0 : i32
    %2 = arith.cmpi ne, %1, %c0_i32_0 : i32
    scf.if %2 {
      %cst_10 = arith.constant 0.000000e+00 : f32
      %13 = vector.broadcast %cst_10 : f32 to vector<16x96xf32>
      %c0_11 = arith.constant 0 : index
      %c0_12 = arith.constant 0 : index
      %14 = vector.load %arg7[%c0_11, %c0_12] : memref<16x96xf32, #tpu.memory_space<vmem>>, vector<16x96xf32>
      tpu.vector_store %arg7[%c0_11, %c0_12], %13 {strides = array<i32>} : memref<16x96xf32, #tpu.memory_space<vmem>>, vector<16x96xf32>,
    } else {
    }
    %c0 = arith.constant 0 : index
    %c0_1 = arith.constant 0 : index
    %3 = vector.load %arg7[%c0, %c0_1] : memref<16x96xf32, #tpu.memory_space<vmem>>, vector<16x96xf32>
    %c0_2 = arith.constant 0 : index
    %c0_3 = arith.constant 0 : index
    %4 = vector.load %arg3[%c0_2, %c0_3] : memref<16x32xf32, #tpu.memory_space<vmem>>, vector<16x32xf32>
    %5 = arith.truncf %4 : vector<16x32xf32> to vector<16x32xbf16>
    %c0_4 = arith.constant 0 : index
    %c0_5 = arith.constant 0 : index
    %6 = vector.load %arg4[%c0_4, %c0_5] : memref<32x96xbf16, #tpu.memory_space<vmem>>, vector<32x96xbf16>
    %cst = arith.constant dense<0.000000e+00> : vector<16x96xf32>
    %7 = tpu.matmul %5, %6, %cst {dimension_numbers = #tpu.dot_dimension_numbers<[1], [0], [0], [1], [0, 0, 1, 1], [], []>} : vector<16x32xbf16>, vector<32x96xbf16>, vector<16x96xf32> -> vector<16x96xf32>
    %8 = arith.addf %3, %7 : vector<16x96xf32>
    %c0_6 = arith.constant 0 : index
    %c0_7 = arith.constant 0 : index
    %9 = vector.load %arg7[%c0_6, %c0_7] : memref<16x96xf32, #tpu.memory_space<vmem>>, vector<16x96xf32>
    tpu.vector_store %arg7[%c0_6, %c0_7], %8 {strides = array<i32>} : memref<16x96xf32, #tpu.memory_space<vmem>>, vector<16x96xf32>,
    %c0_i32_8 = arith.constant 0 : i32
    %10 = arith.cmpi eq, %arg2, %c0_i32_8 : i32
    %11 = arith.extui %10 : i1 to i32
    %c0_i32_9 = arith.constant 0 : i32
    %12 = arith.cmpi ne, %11, %c0_i32_9 : i32
    scf.if %12 {
      %c0_10 = arith.constant 0 : index
      %c0_11 = arith.constant 0 : index
      %13 = vector.load %arg7[%c0_10, %c0_11] : memref<16x96xf32, #tpu.memory_space<vmem>>, vector<16x96xf32>
      %c0_12 = arith.constant 0 : index
      %c0_13 = arith.constant 0 : index
      %14 = vector.load %arg5[%c0_12, %c0_13] : memref<1x96xf32, #tpu.memory_space<vmem>>, vector<1x96xf32>
      %15 = vector.broadcast %14 : vector<1x96xf32> to vector<16x96xf32>
      %16 = arith.addf %13, %15 : vector<16x96xf32>
      %c0_14 = arith.constant 0 : index
      %c0_15 = arith.constant 0 : index
      %17 = vector.load %arg6[%c0_14, %c0_15] : memref<16x96xf32, #tpu.memory_space<vmem>>, vector<16x96xf32>
      tpu.vector_store %arg6[%c0_14, %c0_15], %16 {strides = array<i32>} : memref<16x96xf32, #tpu.memory_space<vmem>>, vector<16x96xf32>,
    } else {
    }
    return
  }
  func.func @transform_0(%arg0: i32, %arg1: i32, %arg2: i32) -> (i32, i32) {
    %c0_i32 = arith.constant 0 : i32
    return %arg0, %arg2 : i32, i32
  }
  func.func @transform_1(%arg0: i32, %arg1: i32, %arg2: i32) -> (i32, i32) {
    %c0_i32 = arith.constant 0 : i32
    return %arg2, %arg1 : i32, i32
  }
  func.func @transform_2(%arg0: i32, %arg1: i32, %arg2: i32) -> (i32, i32) {
    %c0_i32 = arith.constant 0 : i32
    %c0_i32_0 = arith.constant 0 : i32
    return %c0_i32, %arg1 : i32, i32
  }
  func.func @transform_3(%arg0: i32, %arg1: i32, %arg2: i32) -> (i32, i32) {
    %c0_i32 = arith.constant 0 : i32
    return %arg0, %arg1 : i32, i32
  }
}

</mosaic_0001>

<llo_original>
// kernel: tpu_custom_call.1
$region0: #{tpu_custom_call.1}
  #allocation0 [shape = 'u32[]', space=smem, size = 0x4, offset = 0x4, fixed_abs, tag = 'smem constant byte address 0x4 - core index']
  #allocation1 [shape = 'u32[144,128]{1,0:T(1,128)}', space=vmem, size = 0x12000, scoped, tag = 'internal scratch']
  #allocation2 [shape = 'f32[16,96]{1,0:T(8,128)}', space=vmem, size = 0x2000, scoped, tag = 'scratch operand']
  %s0 = inlined_call_operand.hbm [shape: f32[16,32], index: 0, kind: input, shape index: {}]
  %s1 = inlined_call_operand.hbm [shape: bf16[32,96], index: 1, kind: input, shape index: {}]
  %s2 = inlined_call_operand.vmem [shape: f32[1,96], index: 2, kind: input, shape index: {}]
  %s3 = inlined_call_operand.hbm [shape: f32[16,96], index: 3, kind: output, shape index: {}]
  %s4 = sld [smem:[#allocation0]]
  $region38: #{tpu_custom_call.1} parent=0
    _
  %s6 = ssub.s32 1, %s4
  %s7 = scalar_select 0, %s6, %s4
  $region1: #{tpu_custom_call.1} parent=0
    #allocation3 [shape = 'u8[8192]{0}', space=vmem, size = 0x2000, scoped, tag = 'input window, operand 0, single buffered']
    #allocation4 [shape = 's32[1]{0}', space=sflag, size = 0x4, scoped, tag = 'scoped memory for tpu_custom_call.1']
    #allocation5 [shape = 's32[1]{0}', space=sflag, size = 0x4, scoped, tag = 'scoped memory for tpu_custom_call.1']
    #allocation6 [shape = 'u8[8192]{0}', space=vmem, size = 0x2000, scoped, tag = 'input window, operand 1, single buffered']
    #allocation7 [shape = 's32[1]{0}', space=sflag, size = 0x4, scoped, tag = 'scoped memory for tpu_custom_call.1']
    #allocation8 [shape = 'u8[8192]{0}', space=vmem, size = 0x2000, scoped, tag = 'output window, operand 0, single buffered']
    %8 = vsyncpa [#allocation4], 0
    %9 = vsyncpa [#allocation7], 0
    %10 = vsyncpa [#allocation5], 0
    // Predicated region
    $region2: #{tpu_custom_call.1} parent=1 // pred_check
      _
    $region3: #{tpu_custom_call.1} parent=1 // pred_check_branch
      %12 = sbr.rel (0) target = $region5
    $region4: #{tpu_custom_call.1} parent=1 // pred_region
      %s14 = ssub.s32 256, 256
      %15 = vsyncadd [#allocation4], %s14
      %s16 = sshll.u32 [#allocation3], 4
      %s17 = int_to_ptr.vmem [resolvable:$true] %s16
      %22 = dma.hbm_to_vmem [thread:$0]  %s0, 256, %s17, [#allocation4], 128, 128, 8
    $region5: #{tpu_custom_call.1} parent=1 // pred_fallthru
      _
    // Predicated region
    $region6: #{tpu_custom_call.1} parent=1 // pred_check
      _
    $region7: #{tpu_custom_call.1} parent=1 // pred_check_branch
      %24 = sbr.rel (0) target = $region9
    $region8: #{tpu_custom_call.1} parent=1 // pred_region
      %s26 = ssub.s32 256, 256
      %27 = vsyncadd [#allocation7], %s26
      %s28 = sshll.u32 [#allocation6], 4
      %s29 = int_to_ptr.vmem [resolvable:$true] %s28
      %34 = dma.hbm_to_vmem [thread:$0]  %s1, 256, %s29, [#allocation7], 64, 64, 4
    $region9: #{tpu_custom_call.1} parent=1 // pred_fallthru
      _
    // Predicated region
    $region10: #{tpu_custom_call.1} parent=1 // pred_check
      _
    $region11: #{tpu_custom_call.1} parent=1 // pred_check_branch
      %36 = sbr.rel (0) target = $region13
    $region12: #{tpu_custom_call.1} parent=1 // pred_region
      _
    $region13: #{tpu_custom_call.1} parent=1 // pred_fallthru
      _
    // Predicated region
    $region14: #{tpu_custom_call.1} parent=1 // pred_check
      _
    $region15: #{tpu_custom_call.1} parent=1 // pred_check_branch
      %38 = sbr.rel (0) target = $region17
    $region16: #{tpu_custom_call.1} parent=1 // pred_region
      %39 = dma.done [#allocation4], 256
    $region17: #{tpu_custom_call.1} parent=1 // pred_fallthru
      _
    // Predicated region
    $region18: #{tpu_custom_call.1} parent=1 // pred_check
      _
    $region19: #{tpu_custom_call.1} parent=1 // pred_check_branch
      %41 = sbr.rel (0) target = $region21
    $region20: #{tpu_custom_call.1} parent=1 // pred_region
      %42 = dma.done [#allocation7], 256
    $region21: #{tpu_custom_call.1} parent=1 // pred_fallthru
      _
    %p44 = scmp.eq.s32.totalorder 0, 0
    // Predicated region
    $region22: #{tpu_custom_call.1} parent=1 // pred_check
      %p45 = pneg %p44
    $region23: #{tpu_custom_call.1} parent=1 // pred_check_branch
      %47 = sbr.rel (%p45) target = $region25
    $region24: #{tpu_custom_call.1} parent=1 // pred_region
      %vm48 = vcmask 785408
      %49 = vst.msk [vmem:[#allocation2] sm:$0xff] %vm48, 0.0
      %50 = vst.msk [vmem:[#allocation2 + $0x8] sm:$0xff] %vm48, 0.0
    $region25: #{tpu_custom_call.1} parent=1 // pred_fallthru
      _
    %v51 = vld [vmem:[#allocation2] sm:$0xff]
    %v52 = vld [vmem:[#allocation2 + $0x8] sm:$0xff]
    %v53 = vld [vmem:[#allocation3] sm:$0xff]
    %v54 = vld [vmem:[#allocation3 + $0x8] sm:$0xff]
    %v55 = vpack.c.bf16 %v54, %v53
    %v56 = vld [vmem:[#allocation6] sm:$0xf]
    %v57 = vld [vmem:[#allocation6 + $0x4] sm:$0xf]
    %v58 = vld [vmem:[#allocation6 + $0x8] sm:$0xf]
    %v59 = vld [vmem:[#allocation6 + $0xc] sm:$0xf]
    %v64 = vunpack.c.l.b16 %v56
    %v65 = vunpack.c.l.b16 %v57
    %v66 = vunpack.c.l.b16 %v58
    %v67 = vunpack.c.l.b16 %v59
    %v68 = vpack.c.b16 %v65, %v64
    %v69 = vpack.c.b16 %v67, %v66
    %vm72 = vcmask 261120
    %v74 = vsel %vm72, %v55, 0
    %76 = vmatprep.subr.bf16.mxu0 0
    %77 = vmatpush1.bf16.msra.mxu0 0
    %78 = vmatprep.subr.bf16.mxu0 0
    %79 = vmatpush1.bf16.msra.mxu0 0
    %80 = vmatprep.subr.bf16.mxu0 0
    %81 = vmatpush1.bf16.msra.mxu0 0
    %82 = vmatprep.subr.bf16.mxu0 0
    %83 = vmatpush1.bf16.msra.mxu0 0
    %84 = vmatprep.subr.bf16.mxu0 0
    %85 = vmatpush1.bf16.msra.mxu0 0
    %86 = vmatprep.subr.bf16.mxu0 0
    %87 = vmatpush1.bf16.msra.mxu0 0
    %88 = vmatprep.subr.bf16.mxu0 0
    %89 = vmatpush1.bf16.msra.mxu0 %v69
    %90 = vmatprep.subr.bf16.mxu0 0
    %91 = vmatpush1.bf16.msra.mxu0 %v68
    %92 = vmatprep.subr.bf16.mxu0 0
    %93 = vmatpush2.bf16.msra.mxu0 0
    %94 = vmatprep.subr.bf16.mxu0 0
    %95 = vmatpush2.bf16.msra.mxu0 0
    %96 = vmatprep.subr.bf16.mxu0 0
    %97 = vmatpush2.bf16.msra.mxu0 0
    %98 = vmatprep.subr.bf16.mxu0 0
    %99 = vmatpush2.bf16.msra.mxu0 0
    %100 = vmatprep.subr.bf16.mxu0 0
    %101 = vmatpush2.bf16.msra.mxu0 0
    %102 = vmatprep.subr.bf16.mxu0 0
    %103 = vmatpush2.bf16.msra.mxu0 0
    %104 = vmatprep.subr.bf16.mxu0 0
    %105 = vmatpush2.bf16.msra.mxu0 0
    %106 = vmatprep.subr.bf16.mxu0 0
    %107 = vmatpush2.bf16.msra.mxu0 0
    %108 = vmatprep.mubr.bf16.mxu0 0
    %109 = vmatmul.mubr.bf16.gmra.mxu0 %v74
    %v110 = vpop.f32.mrf.mxu0
    %v111 = vadd.f32 0.0, %v110
    %v112 = vpop.f32.mrf.mxu0
    %v113 = vpop.f32.mrf.mxu0
    %v114 = vadd.f32 0.0, %v113
    %v115 = vpop.f32.mrf.mxu0
    %116 = vdwg.mxu0
    %v117 = vadd.f32 %v51, %v111
    %v118 = vadd.f32 %v52, %v114
    %vm119 = vcmask 785408
    %120 = vst.msk [vmem:[#allocation2] sm:$0xff] %vm119, %v117
    %121 = vst.msk [vmem:[#allocation2 + $0x8] sm:$0xff] %vm119, %v118
    // Predicated region
    $region26: #{tpu_custom_call.1} parent=1 // pred_check
      %p122 = pneg %p44
    $region27: #{tpu_custom_call.1} parent=1 // pred_check_branch
      %124 = sbr.rel (%p122) target = $region29
    $region28: #{tpu_custom_call.1} parent=1 // pred_region
      %v125 = vld [vmem:[#allocation2] sm:$0xff]
      %v126 = vld [vmem:[#allocation2 + $0x8] sm:$0xff]
      %v127 = vld [vmem:[%s2] sm:$0x1]
      %v129 = vlaneseq
      %v130 = vshrl.u32 %v129, 7
      %v131 = vsub.s32 0, %v130
      %v132 = vrot.slane %v127, %v131
      %v134 = vadd.f32 %v125, %v132
      %v135 = vadd.f32 %v126, %v132
      %136 = vst.msk [vmem:[#allocation8] sm:$0xff] %vm119, %v134
      %137 = vst.msk [vmem:[#allocation8 + $0x8] sm:$0xff] %vm119, %v135
    $region29: #{tpu_custom_call.1} parent=1 // pred_fallthru
      _
    // Predicated region
    $region30: #{tpu_custom_call.1} parent=1 // pred_check
      _
    $region31: #{tpu_custom_call.1} parent=1 // pred_check_branch
      %139 = sbr.rel (0) target = $region33
    $region32: #{tpu_custom_call.1} parent=1 // pred_region
      %s141 = ssub.s32 256, 256
      %142 = vsyncadd [#allocation5], %s141
      %s143 = sshll.u32 [#allocation8], 4
      %s144 = int_to_ptr.vmem [resolvable:$true] %s143
      %149 = dma.vmem_to_hbm [thread:$0]  %s144, 256, %s3, [#allocation5], 128, 128, 8
    $region33: #{tpu_custom_call.1} parent=1 // pred_fallthru
      _
    // Predicated region
    $region34: #{tpu_custom_call.1} parent=1 // pred_check
      _
    $region35: #{tpu_custom_call.1} parent=1 // pred_check_branch
      %151 = sbr.rel (0) target = $region37
    $region36: #{tpu_custom_call.1} parent=1 // pred_region
      %152 = dma.done [#allocation5], 256
    $region37: #{tpu_custom_call.1} parent=1 // pred_fallthru
      _
    %153 = vsyncpa [#allocation4], 1
    %154 = vsyncpa [#allocation7], 1
    %155 = vsyncpa [#allocation5], 1

</llo_original>
